<compile_context>
chip_gen: v5e
topology: v5e:2x2
jax: 0.10.0
libtpu: 0.0.40
codegen_flags: <defaults>
</compile_context>

<pallas_src>
import math
import functools

import jax
import jax.numpy as jnp
from jax.experimental import pallas as pl
from jax.experimental.pallas import tpu as pltpu

# ----------------------------- config ---------------------------------------
CFG = dict(emb_dim=32, n_heads=4, context_length=8, drop_rate=0.0)
B, N = 2, 8                      # batch, sequence length (n == context_length)
D = CFG["emb_dim"]
H = CFG["n_heads"]
HD = D // H


# ----------------------------- kernel ---------------------------------------
def mha_kernel(x_ref, wqe_ref, wqo_ref, wke_ref, wko_ref, wv_ref,
               c1q_ref, c2q_ref, c1k_ref, c2k_ref,
               bq_ref, bk_ref, bv_ref, wo_ref, bo_ref, bias_ref,
               out_ref, *, n_heads, head_dim):
    x = x_ref[...]                                         # (B*N, D)

    def mm(w_ref):
        return jnp.dot(x, w_ref[...], preferred_element_type=jnp.float32)

    # Rotary embedding: even/odd permutations pre-folded into the weights,
    # rotated biases pre-broadcast, 1/sqrt(head_dim) folded into c1q/c2q/bq.
    q = mm(wqe_ref) * c1q_ref[...] + mm(wqo_ref) * c2q_ref[...] + bq_ref[...]
    k = mm(wke_ref) * c1k_ref[...] + mm(wko_ref) * c2k_ref[...] + bk_ref[...]
    v = mm(wv_ref) + bv_ref[...]

    bias = bias_ref[...]     # (B*N, B*N) additive: causal + batch block-diagonal
    wo = wo_ref[...]         # (D, D)

    acc = jnp.zeros(out_ref.shape, jnp.float32)
    for h in range(n_heads):                               # unrolled (H = 4)
        lo = h * head_dim
        qh = q[:, lo:lo + head_dim]                        # (B*N, hd)
        kh = k[:, lo:lo + head_dim]
        vh = v[:, lo:lo + head_dim]

        s = jax.lax.dot_general(qh, kh, (((1,), (1,)), ((), ())),
                                preferred_element_type=jnp.float32) + bias
        m = jnp.max(s, axis=-1, keepdims=True)
        e = jnp.exp(s - m)
        inv = pl.reciprocal(jnp.sum(e, axis=-1, keepdims=True), approx=True)
        # TODO(synk): nn.Dropout on attention weights is identity here
        # (drop_rate=0.0 / eval mode); PyTorch RNG semantics not reproduced.
        ctx = jnp.dot(e * inv, vh, preferred_element_type=jnp.float32)
        acc = acc + jnp.dot(ctx, wo[lo:lo + head_dim, :],
                            preferred_element_type=jnp.float32)

    out_ref[...] = (acc + bo_ref[...]).astype(out_ref.dtype)


# --------------------- host-side precompute / folding ------------------------
def make_rotary_coeffs(n, d):
    half = d // 2
    freq_range = jnp.arange(half, dtype=jnp.float32)
    freq_cis = jnp.power(10000.0, -2.0 * freq_range / d)
    pos = jnp.arange(n, dtype=jnp.float32)
    freq = pos[:, None] * freq_cis[None, :]                # (N, D/2)
    sin, cos = jnp.sin(freq), jnp.cos(freq)
    c1 = jnp.concatenate([cos, sin], axis=-1)              # multiplies "even" copy
    c2 = jnp.concatenate([-sin, -cos], axis=-1)            # multiplies "odd" copy
    return c1, c2


def fold_even_odd(w):
    # (x@W)[even cols] duplicated into both halves == x @ W_e with W_e being an
    # exact column gather of W (no permutation matmul needed).
    w_e = jnp.concatenate([w[:, 0::2], w[:, 0::2]], axis=1)
    w_o = jnp.concatenate([w[:, 1::2], w[:, 1::2]], axis=1)
    return w_e, w_o


def prepare_operands(params, b, n, d, n_heads):
    wq, bq, wk, bk, wv, bv, wo, bo = params
    c1, c2 = make_rotary_coeffs(n, d)
    scale = 1.0 / math.sqrt(d // n_heads)

    wq_e, wq_o = fold_even_odd(wq)
    wk_e, wk_o = fold_even_odd(wk)
    bq_e, bq_o = fold_even_odd(bq)
    bk_e, bk_o = fold_even_odd(bk)

    # Rotary coefficients tiled to the flattened (b*n) rows; softmax scale
    # folded into the Q-side coefficients.
    c1q = jnp.tile(c1 * scale, (b, 1))
    c2q = jnp.tile(c2 * scale, (b, 1))
    c1k = jnp.tile(c1, (b, 1))
    c2k = jnp.tile(c2, (b, 1))

    # Pre-rotated (and, for Q, pre-scaled) biases broadcast to (b*n, d).
    bq_rot = bq_e * c1q + bq_o * c2q
    bk_rot = bk_e * c1k + bk_o * c2k

    # Additive attention bias on flattened rows: 0 where allowed (same batch,
    # key pos <= query pos), -1e30 otherwise (causal future AND cross-batch).
    rows = jnp.arange(b * n)
    same_batch = (rows[:, None] // n) == (rows[None, :] // n)
    causal = (rows[None, :] % n) <= (rows[:, None] % n)
    bias = jnp.where(same_batch & causal, 0.0, -1e30).astype(jnp.float32)

    return (wq_e, wq_o, wk_e, wk_o, wv,
            c1q, c2q, c1k, c2k, bq_rot, bk_rot, bv, wo, bo, bias)


# ----------------------------- wrapper ---------------------------------------
def multi_head_attention(x, params):
    b, n, d = x.shape
    n_heads = H
    head_dim = d // n_heads
    ops = prepare_operands(params, b, n, d, n_heads)
    x2 = x.reshape(b * n, d)

    kernel = functools.partial(mha_kernel, n_heads=n_heads, head_dim=head_dim)
    vmem = lambda: pl.BlockSpec(memory_space=pltpu.MemorySpace.VMEM)

    out2 = pl.pallas_call(
        kernel,
        out_shape=jax.ShapeDtypeStruct((b * n, d), x.dtype),
        in_specs=[vmem() for _ in range(1 + len(ops))],
        out_specs=vmem(),
    )(x2, *ops)
    return out2.reshape(b, n, d)


# ----------------------------- params ----------------------------------------
def init_params(key, d):
    keys = jax.random.split(key, 8)
    mk_w = lambda k: (jax.random.normal(k, (d, d), jnp.float32) * 0.02)
    mk_b = lambda k: (jax.random.normal(k, (1, d), jnp.float32) * 0.02)
    return (mk_w(keys[0]), mk_b(keys[1]),   # W_q, b_q  (stored (in, out))
            mk_w(keys[2]), mk_b(keys[3]),   # W_k, b_k
            mk_w(keys[4]), mk_b(keys[5]),   # W_v, b_v
            mk_w(keys[6]), mk_b(keys[7]))   # out_proj


# ----------------------------- reference -------------------------------------
def reference_forward(x, params):
    wq, bq, wk, bk, wv, bv, wo, bo = params
    b, n, d = x.shape
    q = x @ wq + bq
    k = x @ wk + bk
    v = x @ wv + bv

    freq_range = jnp.arange(d // 2, dtype=jnp.float32)
    freq_cis = jnp.power(10000.0, -2.0 * freq_range / d)
    pos = jnp.arange(n, dtype=jnp.float32)
    freq = pos[:, None] * freq_cis[None, :]
    sin, cos = jnp.sin(freq)[None], jnp.cos(freq)[None]
    q_odd, q_even = q[..., 1::2], q[..., ::2]
    k_odd, k_even = k[..., 1::2], k[..., ::2]
    q = jnp.concatenate([q_even * cos - q_odd * sin,
                         q_even * sin - q_odd * cos], axis=-1)
    k = jnp.concatenate([k_even * cos - k_odd * sin,
                         k_even * sin - k_odd * cos], axis=-1)

    qh = q.reshape(b, n, H, HD).transpose(0, 2, 1, 3)
    kh = k.reshape(b, n, H, HD).transpose(0, 2, 1, 3)
    vh = v.reshape(b, n, H, HD).transpose(0, 2, 1, 3)
    s = jnp.einsum("bhqd,bhkd->bhqk", qh, kh, precision=jax.lax.Precision.HIGHEST)
    mask = jnp.triu(jnp.ones((n, n)), k=1).astype(bool)
    s = jnp.where(mask, -jnp.inf, s)
    w = jax.nn.softmax(s / math.sqrt(HD), axis=-1)
    ctx = jnp.einsum("bhqk,bhkd->bhqd", w, vh,
                     precision=jax.lax.Precision.HIGHEST)
    ctx = ctx.transpose(0, 2, 1, 3).reshape(b, n, d)
    return ctx @ wo + bo


# ------------------------------- main ----------------------------------------
if __name__ == "__main__":
    key = jax.random.PRNGKey(0)
    kx, kp = jax.random.split(key)
    x = jax.random.normal(kx, (B, N, D), jnp.float32)
    params = init_params(kp, D)

    out = multi_head_attention(x, params)
    out = jax.block_until_ready(out)

    ref = reference_forward(x, params)
    assert out.shape == (B, N, D)
    err = jnp.max(jnp.abs(out - ref))
    assert jnp.allclose(out, ref, atol=1e-2, rtol=1e-2), f"max abs err {err}"

    print("KERNEL_OK")
</pallas_src>

<mosaic_0001>
module attributes {stable_mosaic.version = 11 : i64} {
  func.func @mha_kernel(%arg0: memref<16x32xf32, #tpu.memory_space<vmem>>, %arg1: memref<32x32xf32, #tpu.memory_space<vmem>>, %arg2: memref<32x32xf32, #tpu.memory_space<vmem>>, %arg3: memref<32x32xf32, #tpu.memory_space<vmem>>, %arg4: memref<32x32xf32, #tpu.memory_space<vmem>>, %arg5: memref<32x32xf32, #tpu.memory_space<vmem>>, %arg6: memref<16x32xf32, #tpu.memory_space<vmem>>, %arg7: memref<16x32xf32, #tpu.memory_space<vmem>>, %arg8: memref<16x32xf32, #tpu.memory_space<vmem>>, %arg9: memref<16x32xf32, #tpu.memory_space<vmem>>, %arg10: memref<16x32xf32, #tpu.memory_space<vmem>>, %arg11: memref<16x32xf32, #tpu.memory_space<vmem>>, %arg12: memref<1x32xf32, #tpu.memory_space<vmem>>, %arg13: memref<32x32xf32, #tpu.memory_space<vmem>>, %arg14: memref<1x32xf32, #tpu.memory_space<vmem>>, %arg15: memref<16x16xf32, #tpu.memory_space<vmem>>, %arg16: memref<16x32xf32, #tpu.memory_space<vmem>>) attributes {dimension_semantics = [], scalar_prefetch = 0 : i64, scratch_operands = 0 : i64, tpu.core_type = #tpu.core_type<tc>} {
    %c0 = arith.constant 0 : index
    %c0_0 = arith.constant 0 : index
    %0 = vector.load %arg0[%c0, %c0_0] : memref<16x32xf32, #tpu.memory_space<vmem>>, vector<16x32xf32>
    %c0_1 = arith.constant 0 : index
    %c0_2 = arith.constant 0 : index
    %1 = vector.load %arg1[%c0_1, %c0_2] : memref<32x32xf32, #tpu.memory_space<vmem>>, vector<32x32xf32>
    %cst = arith.constant dense<0.000000e+00> : vector<16x32xf32>
    %2 = tpu.matmul %0, %1, %cst {dimension_numbers = #tpu.dot_dimension_numbers<[1], [0], [0], [1], [0, 0, 1, 1], [], []>} : vector<16x32xf32>, vector<32x32xf32>, vector<16x32xf32> -> vector<16x32xf32>
    %c0_3 = arith.constant 0 : index
    %c0_4 = arith.constant 0 : index
    %3 = vector.load %arg6[%c0_3, %c0_4] : memref<16x32xf32, #tpu.memory_space<vmem>>, vector<16x32xf32>
    %4 = arith.mulf %2, %3 : vector<16x32xf32>
    %c0_5 = arith.constant 0 : index
    %c0_6 = arith.constant 0 : index
    %5 = vector.load %arg2[%c0_5, %c0_6] : memref<32x32xf32, #tpu.memory_space<vmem>>, vector<32x32xf32>
    %cst_7 = arith.constant dense<0.000000e+00> : vector<16x32xf32>
    %6 = tpu.matmul %0, %5, %cst_7 {dimension_numbers = #tpu.dot_dimension_numbers<[1], [0], [0], [1], [0, 0, 1, 1], [], []>} : vector<16x32xf32>, vector<32x32xf32>, vector<16x32xf32> -> vector<16x32xf32>
    %c0_8 = arith.constant 0 : index
    %c0_9 = arith.constant 0 : index
    %7 = vector.load %arg7[%c0_8, %c0_9] : memref<16x32xf32, #tpu.memory_space<vmem>>, vector<16x32xf32>
    %8 = arith.mulf %6, %7 : vector<16x32xf32>
    %9 = arith.addf %4, %8 : vector<16x32xf32>
    %c0_10 = arith.constant 0 : index
    %c0_11 = arith.constant 0 : index
    %10 = vector.load %arg10[%c0_10, %c0_11] : memref<16x32xf32, #tpu.memory_space<vmem>>, vector<16x32xf32>
    %11 = arith.addf %9, %10 : vector<16x32xf32>
    %c0_12 = arith.constant 0 : index
    %c0_13 = arith.constant 0 : index
    %12 = vector.load %arg3[%c0_12, %c0_13] : memref<32x32xf32, #tpu.memory_space<vmem>>, vector<32x32xf32>
    %cst_14 = arith.constant dense<0.000000e+00> : vector<16x32xf32>
    %13 = tpu.matmul %0, %12, %cst_14 {dimension_numbers = #tpu.dot_dimension_numbers<[1], [0], [0], [1], [0, 0, 1, 1], [], []>} : vector<16x32xf32>, vector<32x32xf32>, vector<16x32xf32> -> vector<16x32xf32>
    %c0_15 = arith.constant 0 : index
    %c0_16 = arith.constant 0 : index
    %14 = vector.load %arg8[%c0_15, %c0_16] : memref<16x32xf32, #tpu.memory_space<vmem>>, vector<16x32xf32>
    %15 = arith.mulf %13, %14 : vector<16x32xf32>
    %c0_17 = arith.constant 0 : index
    %c0_18 = arith.constant 0 : index
    %16 = vector.load %arg4[%c0_17, %c0_18] : memref<32x32xf32, #tpu.memory_space<vmem>>, vector<32x32xf32>
    %cst_19 = arith.constant dense<0.000000e+00> : vector<16x32xf32>
    %17 = tpu.matmul %0, %16, %cst_19 {dimension_numbers = #tpu.dot_dimension_numbers<[1], [0], [0], [1], [0, 0, 1, 1], [], []>} : vector<16x32xf32>, vector<32x32xf32>, vector<16x32xf32> -> vector<16x32xf32>
    %c0_20 = arith.constant 0 : index
    %c0_21 = arith.constant 0 : index
    %18 = vector.load %arg9[%c0_20, %c0_21] : memref<16x32xf32, #tpu.memory_space<vmem>>, vector<16x32xf32>
    %19 = arith.mulf %17, %18 : vector<16x32xf32>
    %20 = arith.addf %15, %19 : vector<16x32xf32>
    %c0_22 = arith.constant 0 : index
    %c0_23 = arith.constant 0 : index
    %21 = vector.load %arg11[%c0_22, %c0_23] : memref<16x32xf32, #tpu.memory_space<vmem>>, vector<16x32xf32>
    %22 = arith.addf %20, %21 : vector<16x32xf32>
    %c0_24 = arith.constant 0 : index
    %c0_25 = arith.constant 0 : index
    %23 = vector.load %arg5[%c0_24, %c0_25] : memref<32x32xf32, #tpu.memory_space<vmem>>, vector<32x32xf32>
    %cst_26 = arith.constant dense<0.000000e+00> : vector<16x32xf32>
    %24 = tpu.matmul %0, %23, %cst_26 {dimension_numbers = #tpu.dot_dimension_numbers<[1], [0], [0], [1], [0, 0, 1, 1], [], []>} : vector<16x32xf32>, vector<32x32xf32>, vector<16x32xf32> -> vector<16x32xf32>
    %c0_27 = arith.constant 0 : index
    %c0_28 = arith.constant 0 : index
    %25 = vector.load %arg12[%c0_27, %c0_28] : memref<1x32xf32, #tpu.memory_space<vmem>>, vector<1x32xf32>
    %26 = vector.broadcast %25 : vector<1x32xf32> to vector<16x32xf32>
    %27 = arith.addf %24, %26 : vector<16x32xf32>
    %c0_29 = arith.constant 0 : index
    %c0_30 = arith.constant 0 : index
    %28 = vector.load %arg15[%c0_29, %c0_30] : memref<16x16xf32, #tpu.memory_space<vmem>>, vector<16x16xf32>
    %c0_31 = arith.constant 0 : index
    %c0_32 = arith.constant 0 : index
    %29 = vector.load %arg13[%c0_31, %c0_32] : memref<32x32xf32, #tpu.memory_space<vmem>>, vector<32x32xf32>
    %cst_33 = arith.constant 0.000000e+00 : f32
    %30 = vector.broadcast %cst_33 : f32 to vector<16x32xf32>
    %31 = vector.extract_strided_slice %11 {offsets = [0, 0], sizes = [16, 8], strides = [1, 1]} : vector<16x32xf32> to vector<16x8xf32>
    %32 = vector.extract_strided_slice %22 {offsets = [0, 0], sizes = [16, 8], strides = [1, 1]} : vector<16x32xf32> to vector<16x8xf32>
    %33 = vector.extract_strided_slice %27 {offsets = [0, 0], sizes = [16, 8], strides = [1, 1]} : vector<16x32xf32> to vector<16x8xf32>
    %cst_34 = arith.constant dense<0.000000e+00> : vector<16x16xf32>
    %34 = tpu.matmul %31, %32, %cst_34 {dimension_numbers = #tpu.dot_dimension_numbers<[1], [1], [0], [0], [0, 0, 1, 0], [], []>} : vector<16x8xf32>, vector<16x8xf32>, vector<16x16xf32> -> vector<16x16xf32>
    %35 = arith.addf %34, %28 : vector<16x16xf32>
    %cst_35 = arith.constant dense<0xFF800000> : vector<16xf32>
    %36 = vector.multi_reduction <maximumf>, %35, %cst_35 [1] : vector<16x16xf32> to vector<16xf32>
    %37 = vector.shape_cast %36 : vector<16xf32> to vector<16x1xf32>
    %38 = vector.broadcast %37 : vector<16x1xf32> to vector<16x16xf32>
    %39 = arith.subf %35, %38 : vector<16x16xf32>
    %40 = math.exp %39 : vector<16x16xf32>
    %cst_36 = arith.constant dense<0.000000e+00> : vector<16xf32>
    %41 = vector.multi_reduction <add>, %40, %cst_36 [1] : vector<16x16xf32> to vector<16xf32>
    %42 = vector.shape_cast %41 : vector<16xf32> to vector<16x1xf32>
    %43 = tpu.reciprocal %42 {approx = true} : vector<16x1xf32> -> vector<16x1xf32>
    %44 = vector.broadcast %43 : vector<16x1xf32> to vector<16x16xf32>
    %45 = arith.mulf %40, %44 : vector<16x16xf32>
    %cst_37 = arith.constant dense<0.000000e+00> : vector<16x8xf32>
    %46 = tpu.matmul %45, %33, %cst_37 {dimension_numbers = #tpu.dot_dimension_numbers<[1], [0], [0], [1], [0, 0, 1, 1], [], []>} : vector<16x16xf32>, vector<16x8xf32>, vector<16x8xf32> -> vector<16x8xf32>
    %47 = vector.extract_strided_slice %29 {offsets = [0, 0], sizes = [8, 32], strides = [1, 1]} : vector<32x32xf32> to vector<8x32xf32>
    %cst_38 = arith.constant dense<0.000000e+00> : vector<16x32xf32>
    %48 = tpu.matmul %46, %47, %cst_38 {dimension_numbers = #tpu.dot_dimension_numbers<[1], [0], [0], [1], [0, 0, 1, 1], [], []>} : vector<16x8xf32>, vector<8x32xf32>, vector<16x32xf32> -> vector<16x32xf32>
    %49 = arith.addf %30, %48 : vector<16x32xf32>
    %50 = vector.extract_strided_slice %11 {offsets = [0, 8], sizes = [16, 8], strides = [1, 1]} : vector<16x32xf32> to vector<16x8xf32>
    %51 = vector.extract_strided_slice %22 {offsets = [0, 8], sizes = [16, 8], strides = [1, 1]} : vector<16x32xf32> to vector<16x8xf32>
    %52 = vector.extract_strided_slice %27 {offsets = [0, 8], sizes = [16, 8], strides = [1, 1]} : vector<16x32xf32> to vector<16x8xf32>
    %cst_39 = arith.constant dense<0.000000e+00> : vector<16x16xf32>
    %53 = tpu.matmul %50, %51, %cst_39 {dimension_numbers = #tpu.dot_dimension_numbers<[1], [1], [0], [0], [0, 0, 1, 0], [], []>} : vector<16x8xf32>, vector<16x8xf32>, vector<16x16xf32> -> vector<16x16xf32>
    %54 = arith.addf %53, %28 : vector<16x16xf32>
    %cst_40 = arith.constant dense<0xFF800000> : vector<16xf32>
    %55 = vector.multi_reduction <maximumf>, %54, %cst_40 [1] : vector<16x16xf32> to vector<16xf32>
    %56 = vector.shape_cast %55 : vector<16xf32> to vector<16x1xf32>
    %57 = vector.broadcast %56 : vector<16x1xf32> to vector<16x16xf32>
    %58 = arith.subf %54, %57 : vector<16x16xf32>
    %59 = math.exp %58 : vector<16x16xf32>
    %cst_41 = arith.constant dense<0.000000e+00> : vector<16xf32>
    %60 = vector.multi_reduction <add>, %59, %cst_41 [1] : vector<16x16xf32> to vector<16xf32>
    %61 = vector.shape_cast %60 : vector<16xf32> to vector<16x1xf32>
    %62 = tpu.reciprocal %61 {approx = true} : vector<16x1xf32> -> vector<16x1xf32>
    %63 = vector.broadcast %62 : vector<16x1xf32> to vector<16x16xf32>
    %64 = arith.mulf %59, %63 : vector<16x16xf32>
    %cst_42 = arith.constant dense<0.000000e+00> : vector<16x8xf32>
    %65 = tpu.matmul %64, %52, %cst_42 {dimension_numbers = #tpu.dot_dimension_numbers<[1], [0], [0], [1], [0, 0, 1, 1], [], []>} : vector<16x16xf32>, vector<16x8xf32>, vector<16x8xf32> -> vector<16x8xf32>
    %66 = vector.extract_strided_slice %29 {offsets = [8, 0], sizes = [8, 32], strides = [1, 1]} : vector<32x32xf32> to vector<8x32xf32>
    %cst_43 = arith.constant dense<0.000000e+00> : vector<16x32xf32>
    %67 = tpu.matmul %65, %66, %cst_43 {dimension_numbers = #tpu.dot_dimension_numbers<[1], [0], [0], [1], [0, 0, 1, 1], [], []>} : vector<16x8xf32>, vector<8x32xf32>, vector<16x32xf32> -> vector<16x32xf32>
    %68 = arith.addf %49, %67 : vector<16x32xf32>
    %69 = vector.extract_strided_slice %11 {offsets = [0, 16], sizes = [16, 8], strides = [1, 1]} : vector<16x32xf32> to vector<16x8xf32>
    %70 = vector.extract_strided_slice %22 {offsets = [0, 16], sizes = [16, 8], strides = [1, 1]} : vector<16x32xf32> to vector<16x8xf32>
    %71 = vector.extract_strided_slice %27 {offsets = [0, 16], sizes = [16, 8], strides = [1, 1]} : vector<16x32xf32> to vector<16x8xf32>
    %cst_44 = arith.constant dense<0.000000e+00> : vector<16x16xf32>
    %72 = tpu.matmul %69, %70, %cst_44 {dimension_numbers = #tpu.dot_dimension_numbers<[1], [1], [0], [0], [0, 0, 1, 0], [], []>} : vector<16x8xf32>, vector<16x8xf32>, vector<16x16xf32> -> vector<16x16xf32>
    %73 = arith.addf %72, %28 : vector<16x16xf32>
    %cst_45 = arith.constant dense<0xFF800000> : vector<16xf32>
    %74 = vector.multi_reduction <maximumf>, %73, %cst_45 [1] : vector<16x16xf32> to vector<16xf32>
    %75 = vector.shape_cast %74 : vector<16xf32> to vector<16x1xf32>
    %76 = vector.broadcast %75 : vector<16x1xf32> to vector<16x16xf32>
    %77 = arith.subf %73, %76 : vector<16x16xf32>
    %78 = math.exp %77 : vector<16x16xf32>
    %cst_46 = arith.constant dense<0.000000e+00> : vector<16xf32>
    %79 = vector.multi_reduction <add>, %78, %cst_46 [1] : vector<16x16xf32> to vector<16xf32>
    %80 = vector.shape_cast %79 : vector<16xf32> to vector<16x1xf32>
    %81 = tpu.reciprocal %80 {approx = true} : vector<16x1xf32> -> vector<16x1xf32>
    %82 = vector.broadcast %81 : vector<16x1xf32> to vector<16x16xf32>
    %83 = arith.mulf %78, %82 : vector<16x16xf32>
    %cst_47 = arith.constant dense<0.000000e+00> : vector<16x8xf32>
    %84 = tpu.matmul %83, %71, %cst_47 {dimension_numbers = #tpu.dot_dimension_numbers<[1], [0], [0], [1], [0, 0, 1, 1], [], []>} : vector<16x16xf32>, vector<16x8xf32>, vector<16x8xf32> -> vector<16x8xf32>
    %85 = vector.extract_strided_slice %29 {offsets = [16, 0], sizes = [8, 32], strides = [1, 1]} : vector<32x32xf32> to vector<8x32xf32>
    %cst_48 = arith.constant dense<0.000000e+00> : vector<16x32xf32>
    %86 = tpu.matmul %84, %85, %cst_48 {dimension_numbers = #tpu.dot_dimension_numbers<[1], [0], [0], [1], [0, 0, 1, 1], [], []>} : vector<16x8xf32>, vector<8x32xf32>, vector<16x32xf32> -> vector<16x32xf32>
    %87 = arith.addf %68, %86 : vector<16x32xf32>
    %88 = vector.extract_strided_slice %11 {offsets = [0, 24], sizes = [16, 8], strides = [1, 1]} : vector<16x32xf32> to vector<16x8xf32>
    %89 = vector.extract_strided_slice %22 {offsets = [0, 24], sizes = [16, 8], strides = [1, 1]} : vector<16x32xf32> to vector<16x8xf32>
    %90 = vector.extract_strided_slice %27 {offsets = [0, 24], sizes = [16, 8], strides = [1, 1]} : vector<16x32xf32> to vector<16x8xf32>
    %cst_49 = arith.constant dense<0.000000e+00> : vector<16x16xf32>
    %91 = tpu.matmul %88, %89, %cst_49 {dimension_numbers = #tpu.dot_dimension_numbers<[1], [1], [0], [0], [0, 0, 1, 0], [], []>} : vector<16x8xf32>, vector<16x8xf32>, vector<16x16xf32> -> vector<16x16xf32>
    %92 = arith.addf %91, %28 : vector<16x16xf32>
    %cst_50 = arith.constant dense<0xFF800000> : vector<16xf32>
    %93 = vector.multi_reduction <maximumf>, %92, %cst_50 [1] : vector<16x16xf32> to vector<16xf32>
    %94 = vector.shape_cast %93 : vector<16xf32> to vector<16x1xf32>
    %95 = vector.broadcast %94 : vector<16x1xf32> to vector<16x16xf32>
    %96 = arith.subf %92, %95 : vector<16x16xf32>
    %97 = math.exp %96 : vector<16x16xf32>
    %cst_51 = arith.constant dense<0.000000e+00> : vector<16xf32>
    %98 = vector.multi_reduction <add>, %97, %cst_51 [1] : vector<16x16xf32> to vector<16xf32>
    %99 = vector.shape_cast %98 : vector<16xf32> to vector<16x1xf32>
    %100 = tpu.reciprocal %99 {approx = true} : vector<16x1xf32> -> vector<16x1xf32>
    %101 = vector.broadcast %100 : vector<16x1xf32> to vector<16x16xf32>
    %102 = arith.mulf %97, %101 : vector<16x16xf32>
    %cst_52 = arith.constant dense<0.000000e+00> : vector<16x8xf32>
    %103 = tpu.matmul %102, %90, %cst_52 {dimension_numbers = #tpu.dot_dimension_numbers<[1], [0], [0], [1], [0, 0, 1, 1], [], []>} : vector<16x16xf32>, vector<16x8xf32>, vector<16x8xf32> -> vector<16x8xf32>
    %104 = vector.extract_strided_slice %29 {offsets = [24, 0], sizes = [8, 32], strides = [1, 1]} : vector<32x32xf32> to vector<8x32xf32>
    %cst_53 = arith.constant dense<0.000000e+00> : vector<16x32xf32>
    %105 = tpu.matmul %103, %104, %cst_53 {dimension_numbers = #tpu.dot_dimension_numbers<[1], [0], [0], [1], [0, 0, 1, 1], [], []>} : vector<16x8xf32>, vector<8x32xf32>, vector<16x32xf32> -> vector<16x32xf32>
    %106 = arith.addf %87, %105 : vector<16x32xf32>
    %c0_54 = arith.constant 0 : index
    %c0_55 = arith.constant 0 : index
    %107 = vector.load %arg14[%c0_54, %c0_55] : memref<1x32xf32, #tpu.memory_space<vmem>>, vector<1x32xf32>
    %108 = vector.broadcast %107 : vector<1x32xf32> to vector<16x32xf32>
    %109 = arith.addf %106, %108 : vector<16x32xf32>
    %c0_56 = arith.constant 0 : index
    %c0_57 = arith.constant 0 : index
    %110 = vector.load %arg16[%c0_56, %c0_57] : memref<16x32xf32, #tpu.memory_space<vmem>>, vector<16x32xf32>
    tpu.vector_store %arg16[%c0_56, %c0_57], %109 {strides = array<i32>} : memref<16x32xf32, #tpu.memory_space<vmem>>, vector<16x32xf32>,
    return
  }
}

</mosaic_0001>

<llo_original>
// kernel: tpu_custom_call.1
$region0: #{tpu_custom_call.1}
  #allocation0 [shape = 'u32[]', space=smem, size = 0x4, offset = 0x4, fixed_abs, tag = 'smem constant byte address 0x4 - core index']
  #allocation1 [shape = 'u32[72,128]{1,0:T(1,128)}', space=vmem, size = 0x9000, scoped, tag = 'internal scratch']
  %s0 = inlined_call_operand.hbm [shape: f32[16,32], index: 0, kind: input, shape index: {}]
  %s1 = inlined_call_operand.hbm [shape: f32[32,32], index: 1, kind: input, shape index: {}]
  %s2 = inlined_call_operand.hbm [shape: f32[32,32], index: 2, kind: input, shape index: {}]
  %s3 = inlined_call_operand.hbm [shape: f32[32,32], index: 3, kind: input, shape index: {}]
  %s4 = inlined_call_operand.hbm [shape: f32[32,32], index: 4, kind: input, shape index: {}]
  %s5 = inlined_call_operand.hbm [shape: f32[32,32], index: 5, kind: input, shape index: {}]
  %s6 = inlined_call_operand.hbm [shape: f32[16,32], index: 6, kind: input, shape index: {}]
  %s7 = inlined_call_operand.hbm [shape: f32[16,32], index: 7, kind: input, shape index: {}]
  %s8 = inlined_call_operand.hbm [shape: f32[16,32], index: 8, kind: input, shape index: {}]
  %s9 = inlined_call_operand.hbm [shape: f32[16,32], index: 9, kind: input, shape index: {}]
  %s10 = inlined_call_operand.hbm [shape: f32[16,32], index: 10, kind: input, shape index: {}]
  %s11 = inlined_call_operand.hbm [shape: f32[16,32], index: 11, kind: input, shape index: {}]
  %s12 = inlined_call_operand.vmem [shape: f32[1,32], index: 12, kind: input, shape index: {}]
  %s13 = inlined_call_operand.hbm [shape: f32[32,32], index: 13, kind: input, shape index: {}]
  %s14 = inlined_call_operand.vmem [shape: f32[1,32], index: 14, kind: input, shape index: {}]
  %s15 = inlined_call_operand.hbm [shape: f32[16,16], index: 15, kind: input, shape index: {}]
  %s16 = inlined_call_operand.hbm [shape: f32[16,32], index: 16, kind: output, shape index: {}]
  %s17 = sld [smem:[#allocation0]]
  $region130: #{tpu_custom_call.1} parent=0
    _
  %s19 = ssub.s32 1, %s17
  %s20 = scalar_select 0, %s19, %s17
  $region1: #{tpu_custom_call.1} parent=0
    #allocation2 [shape = 'u8[8192]{0}', space=vmem, size = 0x2000, scoped, tag = 'input window, operand 0, single buffered']
    #allocation3 [shape = 's32[1]{0}', space=sflag, size = 0x4, scoped, tag = 'scoped memory for tpu_custom_call.1']
    #allocation4 [shape = 's32[1]{0}', space=sflag, size = 0x4, scoped, tag = 'scoped memory for tpu_custom_call.1']
    #allocation5 [shape = 'u8[16384]{0}', space=vmem, size = 0x4000, scoped, tag = 'input window, operand 1, single buffered']
    #allocation6 [shape = 's32[1]{0}', space=sflag, size = 0x4, scoped, tag = 'scoped memory for tpu_custom_call.1']
    #allocation7 [shape = 'u8[16384]{0}', space=vmem, size = 0x4000, scoped, tag = 'input window, operand 2, single buffered']
    #allocation8 [shape = 'u8[16384]{0}', space=vmem, size = 0x4000, scoped, tag = 'input window, operand 3, single buffered']
    #allocation9 [shape = 's32[1]{0}', space=sflag, size = 0x4, scoped, tag = 'scoped memory for tpu_custom_call.1']
    #allocation10 [shape = 'u8[16384]{0}', space=vmem, size = 0x4000, scoped, tag = 'input window, operand 4, single buffered']
    #allocation11 [shape = 'u8[16384]{0}', space=vmem, size = 0x4000, scoped, tag = 'input window, operand 5, single buffered']
    #allocation12 [shape = 's32[1]{0}', space=sflag, size = 0x4, scoped, tag = 'scoped memory for tpu_custom_call.1']
    #allocation13 [shape = 'u8[8192]{0}', space=vmem, size = 0x2000, scoped, tag = 'input window, operand 6, single buffered']
    #allocation14 [shape = 'u8[8192]{0}', space=vmem, size = 0x2000, scoped, tag = 'input window, operand 7, single buffered']
    #allocation15 [shape = 's32[1]{0}', space=sflag, size = 0x4, scoped, tag = 'scoped memory for tpu_custom_call.1']
    #allocation16 [shape = 'u8[8192]{0}', space=vmem, size = 0x2000, scoped, tag = 'input window, operand 8, single buffered']
    #allocation17 [shape = 'u8[8192]{0}', space=vmem, size = 0x2000, scoped, tag = 'input window, operand 9, single buffered']
    #allocation18 [shape = 's32[1]{0}', space=sflag, size = 0x4, scoped, tag = 'scoped memory for tpu_custom_call.1']
    #allocation19 [shape = 'u8[8192]{0}', space=vmem, size = 0x2000, scoped, tag = 'input window, operand 10, single buffered']
    #allocation20 [shape = 'u8[8192]{0}', space=vmem, size = 0x2000, scoped, tag = 'input window, operand 11, single buffered']
    #allocation21 [shape = 's32[1]{0}', space=sflag, size = 0x4, scoped, tag = 'scoped memory for tpu_custom_call.1']
    #allocation22 [shape = 'u8[16384]{0}', space=vmem, size = 0x4000, scoped, tag = 'input window, operand 13, single buffered']
    #allocation23 [shape = 'u8[8192]{0}', space=vmem, size = 0x2000, scoped, tag = 'input window, operand 15, single buffered']
    #allocation24 [shape = 's32[1]{0}', space=sflag, size = 0x4, scoped, tag = 'scoped memory for tpu_custom_call.1']
    #allocation25 [shape = 'u8[8192]{0}', space=vmem, size = 0x2000, scoped, tag = 'output window, operand 0, single buffered']
    %21 = vsyncpa [#allocation3], 0
    %22 = vsyncpa [#allocation6], 0
    %23 = vsyncpa [#allocation9], 0
    %24 = vsyncpa [#allocation12], 0
    %25 = vsyncpa [#allocation15], 0
    %26 = vsyncpa [#allocation18], 0
    %27 = vsyncpa [#allocation21], 0
    %28 = vsyncpa [#allocation24], 0
    %29 = vsyncpa [#allocation4], 0
    // Predicated region
    $region2: #{tpu_custom_call.1} parent=1 // pred_check
      _
    $region3: #{tpu_custom_call.1} parent=1 // pred_check_branch
      %31 = sbr.rel (0) target = $region5
    $region4: #{tpu_custom_call.1} parent=1 // pred_region
      %33 = vsyncadd [#allocation3], 0
      %s34 = sshll.u32 %s0, 4
      %s35 = int_to_ptr.hbm [resolvable:$true] %s34
      %s36 = sshll.u32 [#allocation2], 4
      %s37 = int_to_ptr.vmem [resolvable:$true] %s36
      %42 = dma.hbm_to_vmem [thread:$0]  %s35, 256, %s37, [#allocation3], 128, 128, 8
    $region5: #{tpu_custom_call.1} parent=1 // pred_fallthru
      _
    // Predicated region
    $region6: #{tpu_custom_call.1} parent=1 // pred_check
      _
    $region7: #{tpu_custom_call.1} parent=1 // pred_check_branch
      %44 = sbr.rel (0) target = $region9
    $region8: #{tpu_custom_call.1} parent=1 // pred_region
      %46 = vsyncadd [#allocation6], 0
      %s47 = sshll.u32 %s1, 4
      %s48 = int_to_ptr.hbm [resolvable:$true] %s47
      %s49 = sshll.u32 [#allocation5], 4
      %s50 = int_to_ptr.vmem [resolvable:$true] %s49
      %55 = dma.hbm_to_vmem [thread:$0]  %s48, 512, %s50, [#allocation6], 128, 128, 8
    $region9: #{tpu_custom_call.1} parent=1 // pred_fallthru
      _
    // Predicated region
    $region10: #{tpu_custom_call.1} parent=1 // pred_check
      _
    $region11: #{tpu_custom_call.1} parent=1 // pred_check_branch
      %57 = sbr.rel (0) target = $region13
    $region12: #{tpu_custom_call.1} parent=1 // pred_region
      %59 = vsyncadd [#allocation6], 0
      %s60 = sshll.u32 %s2, 4
      %s61 = int_to_ptr.hbm [resolvable:$true] %s60
      %s62 = sshll.u32 [#allocation7], 4
      %s63 = int_to_ptr.vmem [resolvable:$true] %s62
      %68 = dma.hbm_to_vmem [thread:$0]  %s61, 512, %s63, [#allocation6], 128, 128, 8
    $region13: #{tpu_custom_call.1} parent=1 // pred_fallthru
      _
    // Predicated region
    $region14: #{tpu_custom_call.1} parent=1 // pred_check
      _
    $region15: #{tpu_custom_call.1} parent=1 // pred_check_branch
      %70 = sbr.rel (0) target = $region17
    $region16: #{tpu_custom_call.1} parent=1 // pred_region
      %72 = vsyncadd [#allocation9], 0
      %s73 = sshll.u32 %s3, 4
      %s74 = int_to_ptr.hbm [resolvable:$true] %s73
      %s75 = sshll.u32 [#allocation8], 4
      %s76 = int_to_ptr.vmem [resolvable:$true] %s75
      %81 = dma.hbm_to_vmem [thread:$0]  %s74, 512, %s76, [#allocation9], 128, 128, 8
    $region17: #{tpu_custom_call.1} parent=1 // pred_fallthru
      _
    // Predicated region
    $region18: #{tpu_custom_call.1} parent=1 // pred_check
      _
    $region19: #{tpu_custom_call.1} parent=1 // pred_check_branch
      %83 = sbr.rel (0) target = $region21
    $region20: #{tpu_custom_call.1} parent=1 // pred_region
      %85 = vsyncadd [#allocation9], 0
      %s86 = sshll.u32 %s4, 4
      %s87 = int_to_ptr.hbm [resolvable:$true] %s86
      %s88 = sshll.u32 [#allocation10], 4
      %s89 = int_to_ptr.vmem [resolvable:$true] %s88
      %94 = dma.hbm_to_vmem [thread:$0]  %s87, 512, %s89, [#allocation9], 128, 128, 8
    $region21: #{tpu_custom_call.1} parent=1 // pred_fallthru
      _
    // Predicated region
    $region22: #{tpu_custom_call.1} parent=1 // pred_check
      _
    $region23: #{tpu_custom_call.1} parent=1 // pred_check_branch
      %96 = sbr.rel (0) target = $region25
    $region24: #{tpu_custom_call.1} parent=1 // pred_region
      %98 = vsyncadd [#allocation12], 0
      %s99 = sshll.u32 %s5, 4
      %s100 = int_to_ptr.hbm [resolvable:$true] %s99
      %s101 = sshll.u32 [#allocation11], 4
      %s102 = int_to_ptr.vmem [resolvable:$true] %s101
      %107 = dma.hbm_to_vmem [thread:$0]  %s100, 512, %s102, [#allocation12], 128, 128, 8
    $region25: #{tpu_custom_call.1} parent=1 // pred_fallthru
      _
    // Predicated region
    $region26: #{tpu_custom_call.1} parent=1 // pred_check
      _
    $region27: #{tpu_custom_call.1} parent=1 // pred_check_branch
      %109 = sbr.rel (0) target = $region29
    $region28: #{tpu_custom_call.1} parent=1 // pred_region
      %111 = vsyncadd [#allocation12], 0
      %s112 = sshll.u32 %s6, 4
      %s113 = int_to_ptr.hbm [resolvable:$true] %s112
      %s114 = sshll.u32 [#allocation13], 4
      %s115 = int_to_ptr.vmem [resolvable:$true] %s114
      %120 = dma.hbm_to_vmem [thread:$0]  %s113, 256, %s115, [#allocation12], 128, 128, 8
    $region29: #{tpu_custom_call.1} parent=1 // pred_fallthru
      _
    // Predicated region
    $region30: #{tpu_custom_call.1} parent=1 // pred_check
      _
    $region31: #{tpu_custom_call.1} parent=1 // pred_check_branch
      %122 = sbr.rel (0) target = $region33
    $region32: #{tpu_custom_call.1} parent=1 // pred_region
      %124 = vsyncadd [#allocation15], 0
      %s125 = sshll.u32 %s7, 4
      %s126 = int_to_ptr.hbm [resolvable:$true] %s125
      %s127 = sshll.u32 [#allocation14], 4
      %s128 = int_to_ptr.vmem [resolvable:$true] %s127
      %133 = dma.hbm_to_vmem [thread:$0]  %s126, 256, %s128, [#allocation15], 128, 128, 8
    $region33: #{tpu_custom_call.1} parent=1 // pred_fallthru
      _
    // Predicated region
    $region34: #{tpu_custom_call.1} parent=1 // pred_check
      _
    $region35: #{tpu_custom_call.1} parent=1 // pred_check_branch
      %135 = sbr.rel (0) target = $region37
    $region36: #{tpu_custom_call.1} parent=1 // pred_region
      %137 = vsyncadd [#allocation15], 0
      %s138 = sshll.u32 %s8, 4
      %s139 = int_to_ptr.hbm [resolvable:$true] %s138
      %s140 = sshll.u32 [#allocation16], 4
      %s141 = int_to_ptr.vmem [resolvable:$true] %s140
      %146 = dma.hbm_to_vmem [thread:$0]  %s139, 256, %s141, [#allocation15], 128, 128, 8
    $region37: #{tpu_custom_call.1} parent=1 // pred_fallthru
      _
    // Predicated region
    $region38: #{tpu_custom_call.1} parent=1 // pred_check
      _
    $region39: #{tpu_custom_call.1} parent=1 // pred_check_branch
      %148 = sbr.rel (0) target = $region41
    $region40: #{tpu_custom_call.1} parent=1 // pred_region
      %150 = vsyncadd [#allocation18], 0
      %s151 = sshll.u32 %s9, 4
      %s152 = int_to_ptr.hbm [resolvable:$true] %s151
      %s153 = sshll.u32 [#allocation17], 4
      %s154 = int_to_ptr.vmem [resolvable:$true] %s153
      %159 = dma.hbm_to_vmem [thread:$0]  %s152, 256, %s154, [#allocation18], 128, 128, 8
    $region41: #{tpu_custom_call.1} parent=1 // pred_fallthru
      _
    // Predicated region
    $region42: #{tpu_custom_call.1} parent=1 // pred_check
      _
    $region43: #{tpu_custom_call.1} parent=1 // pred_check_branch
      %161 = sbr.rel (0) target = $region45
    $region44: #{tpu_custom_call.1} parent=1 // pred_region
      %163 = vsyncadd [#allocation18], 0
      %s164 = sshll.u32 %s10, 4
      %s165 = int_to_ptr.hbm [resolvable:$true] %s164
      %s166 = sshll.u32 [#allocation19], 4
      %s167 = int_to_ptr.vmem [resolvable:$true] %s166
      %172 = dma.hbm_to_vmem [thread:$0]  %s165, 256, %s167, [#allocation18], 128, 128, 8
    $region45: #{tpu_custom_call.1} parent=1 // pred_fallthru
      _
    // Predicated region
    $region46: #{tpu_custom_call.1} parent=1 // pred_check
      _
    $region47: #{tpu_custom_call.1} parent=1 // pred_check_branch
      %174 = sbr.rel (0) target = $region49
    $region48: #{tpu_custom_call.1} parent=1 // pred_region
      %176 = vsyncadd [#allocation21], 0
      %s177 = sshll.u32 %s11, 4
      %s178 = int_to_ptr.hbm [resolvable:$true] %s177
      %s179 = sshll.u32 [#allocation20], 4
      %s180 = int_to_ptr.vmem [resolvable:$true] %s179
      %185 = dma.hbm_to_vmem [thread:$0]  %s178, 256, %s180, [#allocation21], 128, 128, 8
    $region49: #{tpu_custom_call.1} parent=1 // pred_fallthru
      _
    // Predicated region
    $region50: #{tpu_custom_call.1} parent=1 // pred_check
      _
    $region51: #{tpu_custom_call.1} parent=1 // pred_check_branch
      %187 = sbr.rel (0) target = $region53
    $region52: #{tpu_custom_call.1} parent=1 // pred_region
      _
    $region53: #{tpu_custom_call.1} parent=1 // pred_fallthru
      _
    // Predicated region
    $region54: #{tpu_custom_call.1} parent=1 // pred_check
      _
    $region55: #{tpu_custom_call.1} parent=1 // pred_check_branch
      %189 = sbr.rel (0) target = $region57
    $region56: #{tpu_custom_call.1} parent=1 // pred_region
      %191 = vsyncadd [#allocation21], 0
      %s192 = sshll.u32 %s13, 4
      %s193 = int_to_ptr.hbm [resolvable:$true] %s192
      %s194 = sshll.u32 [#allocation22], 4
      %s195 = int_to_ptr.vmem [resolvable:$true] %s194
      %200 = dma.hbm_to_vmem [thread:$0]  %s193, 512, %s195, [#allocation21], 128, 128, 8
    $region57: #{tpu_custom_call.1} parent=1 // pred_fallthru
      _
    // Predicated region
    $region58: #{tpu_custom_call.1} parent=1 // pred_check
      _
    $region59: #{tpu_custom_call.1} parent=1 // pred_check_branch
      %202 = sbr.rel (0) target = $region61
    $region60: #{tpu_custom_call.1} parent=1 // pred_region
      _
    $region61: #{tpu_custom_call.1} parent=1 // pred_fallthru
      _
    // Predicated region
    $region62: #{tpu_custom_call.1} parent=1 // pred_check
      _
    $region63: #{tpu_custom_call.1} parent=1 // pred_check_branch
      %204 = sbr.rel (0) target = $region65
    $region64: #{tpu_custom_call.1} parent=1 // pred_region
      %206 = vsyncadd [#allocation24], 0
      %s207 = sshll.u32 %s15, 4
      %s208 = int_to_ptr.hbm [resolvable:$true] %s207
      %s209 = sshll.u32 [#allocation23], 4
      %s210 = int_to_ptr.vmem [resolvable:$true] %s209
      %215 = dma.hbm_to_vmem [thread:$0]  %s208, 256, %s210, [#allocation24], 128, 128, 8
    $region65: #{tpu_custom_call.1} parent=1 // pred_fallthru
      _
    // Predicated region
    $region66: #{tpu_custom_call.1} parent=1 // pred_check
      _
    $region67: #{tpu_custom_call.1} parent=1 // pred_check_branch
      %217 = sbr.rel (0) target = $region69
    $region68: #{tpu_custom_call.1} parent=1 // pred_region
      %219 = dma.done [#allocation3], 256
    $region69: #{tpu_custom_call.1} parent=1 // pred_fallthru
      _
    // Predicated region
    $region70: #{tpu_custom_call.1} parent=1 // pred_check
      _
    $region71: #{tpu_custom_call.1} parent=1 // pred_check_branch
      %221 = sbr.rel (0) target = $region73
    $region72: #{tpu_custom_call.1} parent=1 // pred_region
      %223 = dma.done [#allocation6], 512
    $region73: #{tpu_custom_call.1} parent=1 // pred_fallthru
      _
    // Predicated region
    $region74: #{tpu_custom_call.1} parent=1 // pred_check
      _
    $region75: #{tpu_custom_call.1} parent=1 // pred_check_branch
      %225 = sbr.rel (0) target = $region77
    $region76: #{tpu_custom_call.1} parent=1 // pred_region
      %227 = dma.done [#allocation6], 512
    $region77: #{tpu_custom_call.1} parent=1 // pred_fallthru
      _
    // Predicated region
    $region78: #{tpu_custom_call.1} parent=1 // pred_check
      _
    $region79: #{tpu_custom_call.1} parent=1 // pred_check_branch
      %229 = sbr.rel (0) target = $region81
    $region80: #{tpu_custom_call.1} parent=1 // pred_region
      %231 = dma.done [#allocation9], 512
    $region81: #{tpu_custom_call.1} parent=1 // pred_fallthru
      _
    // Predicated region
    $region82: #{tpu_custom_call.1} parent=1 // pred_check
      _
    $region83: #{tpu_custom_call.1} parent=1 // pred_check_branch
      %233 = sbr.rel (0) target = $region85
    $region84: #{tpu_custom_call.1} parent=1 // pred_region
      %235 = dma.done [#allocation9], 512
    $region85: #{tpu_custom_call.1} parent=1 // pred_fallthru
      _
    // Predicated region
    $region86: #{tpu_custom_call.1} parent=1 // pred_check
      _
    $region87: #{tpu_custom_call.1} parent=1 // pred_check_branch
      %237 = sbr.rel (0) target = $region89
    $region88: #{tpu_custom_call.1} parent=1 // pred_region
      %239 = dma.done [#allocation12], 512
    $region89: #{tpu_custom_call.1} parent=1 // pred_fallthru
      _
    // Predicated region
    $region90: #{tpu_custom_call.1} parent=1 // pred_check
      _
    $region91: #{tpu_custom_call.1} parent=1 // pred_check_branch
      %241 = sbr.rel (0) target = $region93
    $region92: #{tpu_custom_call.1} parent=1 // pred_region
      %243 = dma.done [#allocation12], 256
    $region93: #{tpu_custom_call.1} parent=1 // pred_fallthru
      _
    // Predicated region
    $region94: #{tpu_custom_call.1} parent=1 // pred_check
      _
    $region95: #{tpu_custom_call.1} parent=1 // pred_check_branch
      %245 = sbr.rel (0) target = $region97
    $region96: #{tpu_custom_call.1} parent=1 // pred_region
      %247 = dma.done [#allocation15], 256
    $region97: #{tpu_custom_call.1} parent=1 // pred_fallthru
      _
    // Predicated region
    $region98: #{tpu_custom_call.1} parent=1 // pred_check
      _
    $region99: #{tpu_custom_call.1} parent=1 // pred_check_branch
      %249 = sbr.rel (0) target = $region101
    $region100: #{tpu_custom_call.1} parent=1 // pred_region
      %251 = dma.done [#allocation15], 256
    $region101: #{tpu_custom_call.1} parent=1 // pred_fallthru
      _
    // Predicated region
    $region102: #{tpu_custom_call.1} parent=1 // pred_check
      _
    $region103: #{tpu_custom_call.1} parent=1 // pred_check_branch
      %253 = sbr.rel (0) target = $region105
    $region104: #{tpu_custom_call.1} parent=1 // pred_region
      %255 = dma.done [#allocation18], 256
    $region105: #{tpu_custom_call.1} parent=1 // pred_fallthru
      _
    // Predicated region
    $region106: #{tpu_custom_call.1} parent=1 // pred_check
      _
    $region107: #{tpu_custom_call.1} parent=1 // pred_check_branch
      %257 = sbr.rel (0) target = $region109
    $region108: #{tpu_custom_call.1} parent=1 // pred_region
      %259 = dma.done [#allocation18], 256
    $region109: #{tpu_custom_call.1} parent=1 // pred_fallthru
      _
    // Predicated region
    $region110: #{tpu_custom_call.1} parent=1 // pred_check
      _
    $region111: #{tpu_custom_call.1} parent=1 // pred_check_branch
      %261 = sbr.rel (0) target = $region113
    $region112: #{tpu_custom_call.1} parent=1 // pred_region
      %263 = dma.done [#allocation21], 256
    $region113: #{tpu_custom_call.1} parent=1 // pred_fallthru
      _
    // Predicated region
    $region114: #{tpu_custom_call.1} parent=1 // pred_check
      _
    $region115: #{tpu_custom_call.1} parent=1 // pred_check_branch
      %265 = sbr.rel (0) target = $region117
    $region116: #{tpu_custom_call.1} parent=1 // pred_region
      %267 = dma.done [#allocation21], 512
    $region117: #{tpu_custom_call.1} parent=1 // pred_fallthru
      _
    // Predicated region
    $region118: #{tpu_custom_call.1} parent=1 // pred_check
      _
    $region119: #{tpu_custom_call.1} parent=1 // pred_check_branch
      %269 = sbr.rel (0) target = $region121
    $region120: #{tpu_custom_call.1} parent=1 // pred_region
      %271 = dma.done [#allocation24], 256
    $region121: #{tpu_custom_call.1} parent=1 // pred_fallthru
      _
    %v272 = vld [vmem:[#allocation2] sm:$0xff]
    %v273 = vld [vmem:[#allocation2 + $0x8] sm:$0xff]
    %v274 = vld [vmem:[#allocation5] sm:$0xff]
    %v275 = vld [vmem:[#allocation5 + $0x8] sm:$0xff]
    %v276 = vld [vmem:[#allocation5 + $0x10] sm:$0xff]
    %v277 = vld [vmem:[#allocation5 + $0x18] sm:$0xff]
    %vm278 = vcmask 261120
    %v280 = vsel %vm278, %v272, 0
    %v283 = vsel %vm278, %v273, 0
    %285 = vmatpush.msra.mxu0 0.0
    %286 = vmatpush.msra.mxu0 0.0
    %287 = vmatpush.msra.mxu0 0.0
    %288 = vmatpush.msra.mxu0 0.0
    %289 = vmatpush.msra.mxu0 0.0
    %290 = vmatpush.msra.mxu0 0.0
    %291 = vmatpush.msra.mxu0 0.0
    %292 = vmatpush.msra.mxu0 0.0
    %293 = vmatpush.msra.mxu0 0.0
    %294 = vmatpush.msra.mxu0 0.0
    %295 = vmatpush.msra.mxu0 0.0
    %296 = vmatpush.msra.mxu0 0.0
    %297 = vmatpush.msra.mxu0 %v277
    %298 = vmatpush.msra.mxu0 %v276
    %299 = vmatpush.msra.mxu0 %v275
    %300 = vmatpush.msra.mxu0 %v274
    %301 = vmatmul.f32.gmra.mxu0 %v280
    %v302 = vpop.f32.mrf.mxu0
    %v303 = vadd.f32 0.0, %v302
    %304 = vmatmul.f32.gmra.mxu0 %v283
    %v305 = vpop.f32.mrf.mxu0
    %v306 = vadd.f32 0.0, %v305
    %307 = vdwg.mxu0
    %v308 = vld [vmem:[#allocation13] sm:$0xff]
    %v309 = vld [vmem:[#allocation13 + $0x8] sm:$0xff]
    %v310 = vmul.f32 %v303, %v308
    %v311 = vmul.f32 %v306, %v309
    %v312 = vld [vmem:[#allocation7] sm:$0xff]
    %v313 = vld [vmem:[#allocation7 + $0x8] sm:$0xff]
    %v314 = vld [vmem:[#allocation7 + $0x10] sm:$0xff]
    %v315 = vld [vmem:[#allocation7 + $0x18] sm:$0xff]
    %316 = vmatpush.msra.mxu0 0.0
    %317 = vmatpush.msra.mxu0 0.0
    %318 = vmatpush.msra.mxu0 0.0
    %319 = vmatpush.msra.mxu0 0.0
    %320 = vmatpush.msra.mxu0 0.0
    %321 = vmatpush.msra.mxu0 0.0
    %322 = vmatpush.msra.mxu0 0.0
    %323 = vmatpush.msra.mxu0 0.0
    %324 = vmatpush.msra.mxu0 0.0
    %325 = vmatpush.msra.mxu0 0.0
    %326 = vmatpush.msra.mxu0 0.0
    %327 = vmatpush.msra.mxu0 0.0
    %328 = vmatpush.msra.mxu0 %v315
    %329 = vmatpush.msra.mxu0 %v314
    %330 = vmatpush.msra.mxu0 %v313
    %331 = vmatpush.msra.mxu0 %v312
    %332 = vmatmul.f32.gmra.mxu0 %v280
    %v333 = vpop.f32.mrf.mxu0
    %v334 = vadd.f32 0.0, %v333
    %335 = vmatmul.f32.gmra.mxu0 %v283
    %v336 = vpop.f32.mrf.mxu0
    %v337 = vadd.f32 0.0, %v336
    %338 = vdwg.mxu0
    %v339 = vld [vmem:[#allocation14] sm:$0xff]
    %v340 = vld [vmem:[#allocation14 + $0x8] sm:$0xff]
    %v341 = vmul.f32 %v334, %v339
    %v342 = vmul.f32 %v337, %v340
    %v343 = vadd.f32 %v310, %v341
    %v344 = vadd.f32 %v311, %v342
    %v345 = vld [vmem:[#allocation19] sm:$0xff]
    %v346 = vld [vmem:[#allocation19 + $0x8] sm:$0xff]
    %v347 = vadd.f32 %v343, %v345
    %v348 = vadd.f32 %v344, %v346
    %v349 = vld [vmem:[#allocation8] sm:$0xff]
    %v350 = vld [vmem:[#allocation8 + $0x8] sm:$0xff]
    %v351 = vld [vmem:[#allocation8 + $0x10] sm:$0xff]
    %v352 = vld [vmem:[#allocation8 + $0x18] sm:$0xff]
    %353 = vmatpush.msra.mxu0 0.0
    %354 = vmatpush.msra.mxu0 0.0
    %355 = vmatpush.msra.mxu0 0.0
    %356 = vmatpush.msra.mxu0 0.0
    %357 = vmatpush.msra.mxu0 0.0
    %358 = vmatpush.msra.mxu0 0.0
    %359 = vmatpush.msra.mxu0 0.0
    %360 = vmatpush.msra.mxu0 0.0
    %361 = vmatpush.msra.mxu0 0.0
    %362 = vmatpush.msra.mxu0 0.0
    %363 = vmatpush.msra.mxu0 0.0
    %364 = vmatpush.msra.mxu0 0.0
    %365 = vmatpush.msra.mxu0 %v352
    %366 = vmatpush.msra.mxu0 %v351
    %367 = vmatpush.msra.mxu0 %v350
    %368 = vmatpush.msra.mxu0 %v349
    %369 = vmatmul.f32.gmra.mxu0 %v280
    %v370 = vpop.f32.mrf.mxu0
    %v371 = vadd.f32 0.0, %v370
    %372 = vmatmul.f32.gmra.mxu0 %v283
    %v373 = vpop.f32.mrf.mxu0
    %v374 = vadd.f32 0.0, %v373
    %375 = vdwg.mxu0
    %v376 = vld [vmem:[#allocation16] sm:$0xff]
    %v377 = vld [vmem:[#allocation16 + $0x8] sm:$0xff]
    %v378 = vmul.f32 %v371, %v376
    %v379 = vmul.f32 %v374, %v377
    %v380 = vld [vmem:[#allocation10] sm:$0xff]
    %v381 = vld [vmem:[#allocation10 + $0x8] sm:$0xff]
    %v382 = vld [vmem:[#allocation10 + $0x10] sm:$0xff]
    %v383 = vld [vmem:[#allocation10 + $0x18] sm:$0xff]
    %384 = vmatpush.msra.mxu0 0.0
    %385 = vmatpush.msra.mxu0 0.0
    %386 = vmatpush.msra.mxu0 0.0
    %387 = vmatpush.msra.mxu0 0.0
    %388 = vmatpush.msra.mxu0 0.0
    %389 = vmatpush.msra.mxu0 0.0
    %390 = vmatpush.msra.mxu0 0.0
    %391 = vmatpush.msra.mxu0 0.0
    %392 = vmatpush.msra.mxu0 0.0
    %393 = vmatpush.msra.mxu0 0.0
    %394 = vmatpush.msra.mxu0 0.0
    %395 = vmatpush.msra.mxu0 0.0
    %396 = vmatpush.msra.mxu0 %v383
    %397 = vmatpush.msra.mxu0 %v382
    %398 = vmatpush.msra.mxu0 %v381
    %399 = vmatpush.msra.mxu0 %v380
    %400 = vmatmul.f32.gmra.mxu0 %v280
    %v401 = vpop.f32.mrf.mxu0
    %v402 = vadd.f32 0.0, %v401
    %403 = vmatmul.f32.gmra.mxu0 %v283
    %v404 = vpop.f32.mrf.mxu0
    %v405 = vadd.f32 0.0, %v404
    %406 = vdwg.mxu0
    %v407 = vld [vmem:[#allocation17] sm:$0xff]
    %v408 = vld [vmem:[#allocation17 + $0x8] sm:$0xff]
    %v409 = vmul.f32 %v402, %v407
    %v410 = vmul.f32 %v405, %v408
    %v411 = vadd.f32 %v378, %v409
    %v412 = vadd.f32 %v379, %v410
    %v413 = vld [vmem:[#allocation20] sm:$0xff]
    %v414 = vld [vmem:[#allocation20 + $0x8] sm:$0xff]
    %v415 = vadd.f32 %v411, %v413
    %v416 = vadd.f32 %v412, %v414
    %v417 = vld [vmem:[#allocation11] sm:$0xff]
    %v418 = vld [vmem:[#allocation11 + $0x8] sm:$0xff]
    %v419 = vld [vmem:[#allocation11 + $0x10] sm:$0xff]
    %v420 = vld [vmem:[#allocation11 + $0x18] sm:$0xff]
    %v421 = vld [vmem:[%s12] sm:$0x1]
    %v423 = vperm.slane %v421, 0
    %425 = vmatpush.msra.mxu0 0.0
    %426 = vmatpush.msra.mxu0 0.0
    %427 = vmatpush.msra.mxu0 0.0
    %428 = vmatpush.msra.mxu0 0.0
    %429 = vmatpush.msra.mxu0 0.0
    %430 = vmatpush.msra.mxu0 0.0
    %431 = vmatpush.msra.mxu0 0.0
    %432 = vmatpush.msra.mxu0 0.0
    %433 = vmatpush.msra.mxu0 0.0
    %434 = vmatpush.msra.mxu0 0.0
    %435 = vmatpush.msra.mxu0 0.0
    %436 = vmatpush.msra.mxu0 0.0
    %437 = vmatpush.msra.mxu0 %v420
    %438 = vmatpush.msra.mxu0 %v419
    %439 = vmatpush.msra.mxu0 %v418
    %440 = vmatpush.msra.mxu0 %v417
    %441 = vmatmul.f32.gmra.mxu0 %v280
    %v442 = vpop.f32.mrf.mxu0
    %v443 = vadd.f32 %v423, %v442
    %444 = vmatmul.f32.gmra.mxu0 %v283
    %v445 = vpop.f32.mrf.mxu0
    %v446 = vadd.f32 %v423, %v445
    %447 = vdwg.mxu0
    %v448 = vld [vmem:[#allocation23] sm:$0xff]
    %v449 = vld [vmem:[#allocation23 + $0x8] sm:$0xff]
    %v450 = vld [vmem:[#allocation22] sm:$0xff]
    %v451 = vld [vmem:[#allocation22 + $0x8] sm:$0xff]
    %v452 = vld [vmem:[#allocation22 + $0x10] sm:$0xff]
    %v453 = vld [vmem:[#allocation22 + $0x18] sm:$0xff]
    %vm454 = vcmask 64512
    %v456 = vsel %vm454, %v347, 0
    %v459 = vsel %vm454, %v348, 0
    %v462 = vsel %vm454, %v415, 0
    %v465 = vsel %vm454, %v416, 0
    %467 = vmatpush.xpose.msra.mxu0 0.0
    %468 = vmatpush.xpose.msra.mxu0 0.0
    %469 = vmatpush.xpose.msra.mxu0 0.0
    %470 = vmatpush.xpose.msra.mxu0 0.0
    %471 = vmatpush.xpose.msra.mxu0 0.0
    %472 = vmatpush.xpose.msra.mxu0 0.0
    %473 = vmatpush.xpose.msra.mxu0 0.0
    %474 = vmatpush.xpose.msra.mxu0 0.0
    %475 = vmatpush.xpose.msra.mxu0 0.0
    %476 = vmatpush.xpose.msra.mxu0 0.0
    %477 = vmatpush.xpose.msra.mxu0 0.0
    %478 = vmatpush.xpose.msra.mxu0 0.0
    %479 = vmatpush.xpose.msra.mxu0 0.0
    %480 = vmatpush.xpose.msra.mxu0 0.0
    %481 = vmatpush.xpose.msra.mxu0 %v465
    %482 = vmatpush.xpose.msra.mxu0 %v462
    %483 = vmatmul.f32.gmra.mxu0 %v456
    %v484 = vpop.f32.mrf.mxu0
    %v485 = vadd.f32 %v448, %v484
    %486 = vmatmul.f32.gmra.mxu0 %v459
    %v487 = vpop.f32.mrf.mxu0
    %v488 = vadd.f32 %v449, %v487
    %489 = vdwg.mxu0
    %vm490 = vcmask 130048
    %v491 = vsel %vm490, %v485, -inf
    %492 = vmax.xlane.f32.xlu0 %v491
    %v493 = vpop.xlane.xlu0 %492
    %v494 = vsel %vm490, %v488, -inf
    %495 = vmax.xlane.f32.xlu0 %v494
    %v496 = vpop.xlane.xlu0 %495
    %v497 = vsub.f32 %v485, %v493
    %v498 = vsub.f32 %v488, %v496
    %v499 = vmul.f32 %v497, 1.442695
    %v500 = vpow.pop %v499
    %v501 = vmul.f32 %v498, 1.442695
    %v502 = vpow.pop %v501
    %v503 = vsel %vm490, %v500, 0.0
    %504 = vadd.xlane.f32.xlu0 %v503
    %v505 = vpop.xlane.xlu0 %504
    %v506 = vsel %vm490, %v502, 0.0
    %507 = vadd.xlane.f32.xlu0 %v506
    %v508 = vpop.xlane.xlu0 %507
    %v509 = vrcp.pop %v505
    %v510 = vrcp.pop %v508
    %v511 = vmul.f32 %v500, %v509
    %v512 = vmul.f32 %v502, %v510
    %v514 = vsel %vm490, %v511, 0
    %v517 = vsel %vm490, %v512, 0
    %519 = vmatpush.msra.mxu0 0.0
    %520 = vmatpush.msra.mxu0 0.0
    %521 = vmatpush.msra.mxu0 0.0
    %522 = vmatpush.msra.mxu0 0.0
    %523 = vmatpush.msra.mxu0 0.0
    %524 = vmatpush.msra.mxu0 0.0
    %525 = vmatpush.msra.mxu0 0.0
    %526 = vmatpush.msra.mxu0 0.0
    %527 = vmatpush.msra.mxu0 0.0
    %528 = vmatpush.msra.mxu0 0.0
    %529 = vmatpush.msra.mxu0 0.0
    %530 = vmatpush.msra.mxu0 0.0
    %531 = vmatpush.msra.mxu0 0.0
    %532 = vmatpush.msra.mxu0 0.0
    %533 = vmatpush.msra.mxu0 %v446
    %534 = vmatpush.msra.mxu0 %v443
    %535 = vmatmul.f32.gmra.mxu0 %v514
    %v536 = vpop.f32.mrf.mxu0
    %v537 = vadd.f32 0.0, %v536
    %538 = vmatmul.f32.gmra.mxu0 %v517
    %v539 = vpop.f32.mrf.mxu0
    %v540 = vadd.f32 0.0, %v539
    %541 = vdwg.mxu0
    %542 = vrot.lane.b32.xlu0 %v347, 120
    %v543 = vpop.permute.xlu0 %542
    %544 = vrot.lane.b32.xlu0 %v348, 120
    %v545 = vpop.permute.xlu0 %544
    %546 = vrot.lane.b32.xlu0 %v415, 120
    %v547 = vpop.permute.xlu0 %546
    %548 = vrot.lane.b32.xlu0 %v416, 120
    %v549 = vpop.permute.xlu0 %548
    %v550 = vsel %vm454, %v543, 0
    %v552 = vsel %vm454, %v545, 0
    %v554 = vsel %vm454, %v547, 0
    %v556 = vsel %vm454, %v549, 0
    %558 = vmatpush.xpose.msra.mxu0 0.0
    %559 = vmatpush.xpose.msra.mxu0 0.0
    %560 = vmatpush.xpose.msra.mxu0 0.0
    %561 = vmatpush.xpose.msra.mxu0 0.0
    %562 = vmatpush.xpose.msra.mxu0 0.0
    %563 = vmatpush.xpose.msra.mxu0 0.0
    %564 = vmatpush.xpose.msra.mxu0 0.0
    %565 = vmatpush.xpose.msra.mxu0 0.0
    %566 = vmatpush.xpose.msra.mxu0 0.0
    %567 = vmatpush.xpose.msra.mxu0 0.0
    %568 = vmatpush.xpose.msra.mxu0 0.0
    %569 = vmatpush.xpose.msra.mxu0 0.0
    %570 = vmatpush.xpose.msra.mxu0 0.0
    %571 = vmatpush.xpose.msra.mxu0 0.0
    %572 = vmatpush.xpose.msra.mxu0 %v556
    %573 = vmatpush.xpose.msra.mxu0 %v554
    %574 = vmatmul.f32.gmra.mxu0 %v550
    %v575 = vpop.f32.mrf.mxu0
    %v576 = vadd.f32 %v448, %v575
    %577 = vmatmul.f32.gmra.mxu0 %v552
    %v578 = vpop.f32.mrf.mxu0
    %v579 = vadd.f32 %v449, %v578
    %580 = vdwg.mxu0
    %v581 = vsel %vm490, %v576, -inf
    %582 = vmax.xlane.f32.xlu0 %v581
    %v583 = vpop.xlane.xlu0 %582
    %v584 = vsel %vm490, %v579, -inf
    %585 = vmax.xlane.f32.xlu0 %v584
    %v586 = vpop.xlane.xlu0 %585
    %v587 = vsub.f32 %v576, %v583
    %v588 = vsub.f32 %v579, %v586
    %v589 = vmul.f32 %v587, 1.442695
    %v590 = vpow.pop %v589
    %v591 = vmul.f32 %v588, 1.442695
    %v592 = vpow.pop %v591
    %v593 = vsel %vm490, %v590, 0.0
    %594 = vadd.xlane.f32.xlu0 %v593
    %v595 = vpop.xlane.xlu0 %594
    %v596 = vsel %vm490, %v592, 0.0
    %597 = vadd.xlane.f32.xlu0 %v596
    %v598 = vpop.xlane.xlu0 %597
    %v599 = vrcp.pop %v595
    %v600 = vrcp.pop %v598
    %v601 = vmul.f32 %v590, %v599
    %v602 = vmul.f32 %v592, %v600
    %605 = vrot.lane.b32.xlu0 %v443, 120
    %v606 = vpop.permute.xlu0 %605
    %607 = vrot.lane.b32.xlu0 %v446, 120
    %v608 = vpop.permute.xlu0 %607
    %v612 = vsel %vm490, %v601, 0
    %v615 = vsel %vm490, %v602, 0
    %617 = vmatpush.msra.mxu0 0.0
    %618 = vmatpush.msra.mxu0 0.0
    %619 = vmatpush.msra.mxu0 0.0
    %620 = vmatpush.msra.mxu0 0.0
    %621 = vmatpush.msra.mxu0 0.0
    %622 = vmatpush.msra.mxu0 0.0
    %623 = vmatpush.msra.mxu0 0.0
    %624 = vmatpush.msra.mxu0 0.0
    %625 = vmatpush.msra.mxu0 0.0
    %626 = vmatpush.msra.mxu0 0.0
    %627 = vmatpush.msra.mxu0 0.0
    %628 = vmatpush.msra.mxu0 0.0
    %629 = vmatpush.msra.mxu0 0.0
    %630 = vmatpush.msra.mxu0 0.0
    %631 = vmatpush.msra.mxu0 %v608
    %632 = vmatpush.msra.mxu0 %v606
    %633 = vmatmul.f32.gmra.mxu0 %v612
    %v634 = vpop.f32.mrf.mxu0
    %v635 = vadd.f32 0.0, %v634
    %636 = vmatmul.f32.gmra.mxu0 %v615
    %v637 = vpop.f32.mrf.mxu0
    %v638 = vadd.f32 0.0, %v637
    %639 = vdwg.mxu0
    %v641 = vsel %vm454, %v635, 0
    %v644 = vsel %vm454, %v638, 0
    %646 = vmatpush.msra.mxu0 0.0
    %647 = vmatpush.msra.mxu0 0.0
    %648 = vmatpush.msra.mxu0 0.0
    %649 = vmatpush.msra.mxu0 0.0
    %650 = vmatpush.msra.mxu0 0.0
    %651 = vmatpush.msra.mxu0 0.0
    %652 = vmatpush.msra.mxu0 0.0
    %653 = vmatpush.msra.mxu0 0.0
    %654 = vmatpush.msra.mxu0 0.0
    %655 = vmatpush.msra.mxu0 0.0
    %656 = vmatpush.msra.mxu0 0.0
    %657 = vmatpush.msra.mxu0 0.0
    %658 = vmatpush.msra.mxu0 0.0
    %659 = vmatpush.msra.mxu0 0.0
    %660 = vmatpush.msra.mxu0 0.0
    %661 = vmatpush.msra.mxu0 %v451
    %662 = vmatmul.f32.gmra.mxu0 %v641
    %v663 = vpop.f32.mrf.mxu0
    %v664 = vadd.f32 0.0, %v663
    %665 = vmatmul.f32.gmra.mxu0 %v644
    %v666 = vpop.f32.mrf.mxu0
    %v667 = vadd.f32 0.0, %v666
    %668 = vdwg.mxu0
    %v670 = vsel %vm454, %v537, 0
    %v673 = vsel %vm454, %v540, 0
    %675 = vmatpush.msra.mxu0 0.0
    %676 = vmatpush.msra.mxu0 0.0
    %677 = vmatpush.msra.mxu0 0.0
    %678 = vmatpush.msra.mxu0 0.0
    %679 = vmatpush.msra.mxu0 0.0
    %680 = vmatpush.msra.mxu0 0.0
    %681 = vmatpush.msra.mxu0 0.0
    %682 = vmatpush.msra.mxu0 0.0
    %683 = vmatpush.msra.mxu0 0.0
    %684 = vmatpush.msra.mxu0 0.0
    %685 = vmatpush.msra.mxu0 0.0
    %686 = vmatpush.msra.mxu0 0.0
    %687 = vmatpush.msra.mxu0 0.0
    %688 = vmatpush.msra.mxu0 0.0
    %689 = vmatpush.msra.mxu0 0.0
    %690 = vmatpush.msra.mxu0 %v450
    %691 = vmatmul.f32.gmra.mxu0 %v670
    %v692 = vpop.f32.mrf.mxu0
    %v693 = vadd.f32 %v664, %v692
    %694 = vmatmul.f32.gmra.mxu0 %v673
    %v695 = vpop.f32.mrf.mxu0
    %v696 = vadd.f32 %v667, %v695
    %697 = vdwg.mxu0
    %698 = vrot.lane.b32.xlu0 %v347, 112
    %v699 = vpop.permute.xlu0 %698
    %700 = vrot.lane.b32.xlu0 %v348, 112
    %v701 = vpop.permute.xlu0 %700
    %702 = vrot.lane.b32.xlu0 %v415, 112
    %v703 = vpop.permute.xlu0 %702
    %704 = vrot.lane.b32.xlu0 %v416, 112
    %v705 = vpop.permute.xlu0 %704
    %v706 = vsel %vm454, %v699, 0
    %v708 = vsel %vm454, %v701, 0
    %v710 = vsel %vm454, %v703, 0
    %v712 = vsel %vm454, %v705, 0
    %714 = vmatpush.xpose.msra.mxu0 0.0
    %715 = vmatpush.xpose.msra.mxu0 0.0
    %716 = vmatpush.xpose.msra.mxu0 0.0
    %717 = vmatpush.xpose.msra.mxu0 0.0
    %718 = vmatpush.xpose.msra.mxu0 0.0
    %719 = vmatpush.xpose.msra.mxu0 0.0
    %720 = vmatpush.xpose.msra.mxu0 0.0
    %721 = vmatpush.xpose.msra.mxu0 0.0
    %722 = vmatpush.xpose.msra.mxu0 0.0
    %723 = vmatpush.xpose.msra.mxu0 0.0
    %724 = vmatpush.xpose.msra.mxu0 0.0
    %725 = vmatpush.xpose.msra.mxu0 0.0
    %726 = vmatpush.xpose.msra.mxu0 0.0
    %727 = vmatpush.xpose.msra.mxu0 0.0
    %728 = vmatpush.xpose.msra.mxu0 %v712
    %729 = vmatpush.xpose.msra.mxu0 %v710
    %730 = vmatmul.f32.gmra.mxu0 %v706
    %v731 = vpop.f32.mrf.mxu0
    %v732 = vadd.f32 %v448, %v731
    %733 = vmatmul.f32.gmra.mxu0 %v708
    %v734 = vpop.f32.mrf.mxu0
    %v735 = vadd.f32 %v449, %v734
    %736 = vdwg.mxu0
    %v737 = vsel %vm490, %v732, -inf
    %738 = vmax.xlane.f32.xlu0 %v737
    %v739 = vpop.xlane.xlu0 %738
    %v740 = vsel %vm490, %v735, -inf
    %741 = vmax.xlane.f32.xlu0 %v740
    %v742 = vpop.xlane.xlu0 %741
    %v743 = vsub.f32 %v732, %v739
    %v744 = vsub.f32 %v735, %v742
    %v745 = vmul.f32 %v743, 1.442695
    %v746 = vpow.pop %v745
    %v747 = vmul.f32 %v744, 1.442695
    %v748 = vpow.pop %v747
    %v749 = vsel %vm490, %v746, 0.0
    %750 = vadd.xlane.f32.xlu0 %v749
    %v751 = vpop.xlane.xlu0 %750
    %v752 = vsel %vm490, %v748, 0.0
    %753 = vadd.xlane.f32.xlu0 %v752
    %v754 = vpop.xlane.xlu0 %753
    %v755 = vrcp.pop %v751
    %v756 = vrcp.pop %v754
    %v757 = vmul.f32 %v746, %v755
    %v758 = vmul.f32 %v748, %v756
    %759 = vrot.lane.b32.xlu0 %v443, 112
    %v760 = vpop.permute.xlu0 %759
    %761 = vrot.lane.b32.xlu0 %v446, 112
    %v762 = vpop.permute.xlu0 %761
    %v766 = vsel %vm490, %v757, 0
    %v769 = vsel %vm490, %v758, 0
    %771 = vmatpush.msra.mxu0 0.0
    %772 = vmatpush.msra.mxu0 0.0
    %773 = vmatpush.msra.mxu0 0.0
    %774 = vmatpush.msra.mxu0 0.0
    %775 = vmatpush.msra.mxu0 0.0
    %776 = vmatpush.msra.mxu0 0.0
    %777 = vmatpush.msra.mxu0 0.0
    %778 = vmatpush.msra.mxu0 0.0
    %779 = vmatpush.msra.mxu0 0.0
    %780 = vmatpush.msra.mxu0 0.0
    %781 = vmatpush.msra.mxu0 0.0
    %782 = vmatpush.msra.mxu0 0.0
    %783 = vmatpush.msra.mxu0 0.0
    %784 = vmatpush.msra.mxu0 0.0
    %785 = vmatpush.msra.mxu0 %v762
    %786 = vmatpush.msra.mxu0 %v760
    %787 = vmatmul.f32.gmra.mxu0 %v766
    %v788 = vpop.f32.mrf.mxu0
    %v789 = vadd.f32 0.0, %v788
    %790 = vmatmul.f32.gmra.mxu0 %v769
    %v791 = vpop.f32.mrf.mxu0
    %v792 = vadd.f32 0.0, %v791
    %793 = vdwg.mxu0
    %v795 = vsel %vm454, %v789, 0
    %v798 = vsel %vm454, %v792, 0
    %800 = vmatpush.msra.mxu0 0.0
    %801 = vmatpush.msra.mxu0 0.0
    %802 = vmatpush.msra.mxu0 0.0
    %803 = vmatpush.msra.mxu0 0.0
    %804 = vmatpush.msra.mxu0 0.0
    %805 = vmatpush.msra.mxu0 0.0
    %806 = vmatpush.msra.mxu0 0.0
    %807 = vmatpush.msra.mxu0 0.0
    %808 = vmatpush.msra.mxu0 0.0
    %809 = vmatpush.msra.mxu0 0.0
    %810 = vmatpush.msra.mxu0 0.0
    %811 = vmatpush.msra.mxu0 0.0
    %812 = vmatpush.msra.mxu0 0.0
    %813 = vmatpush.msra.mxu0 0.0
    %814 = vmatpush.msra.mxu0 0.0
    %815 = vmatpush.msra.mxu0 %v452
    %816 = vmatmul.f32.gmra.mxu0 %v795
    %v817 = vpop.f32.mrf.mxu0
    %v818 = vadd.f32 0.0, %v817
    %819 = vmatmul.f32.gmra.mxu0 %v798
    %v820 = vpop.f32.mrf.mxu0
    %v821 = vadd.f32 0.0, %v820
    %822 = vdwg.mxu0
    %v823 = vadd.f32 %v693, %v818
    %v824 = vadd.f32 %v696, %v821
    %825 = vrot.lane.b32.xlu0 %v347, 104
    %v826 = vpop.permute.xlu0 %825
    %827 = vrot.lane.b32.xlu0 %v348, 104
    %v828 = vpop.permute.xlu0 %827
    %829 = vrot.lane.b32.xlu0 %v415, 104
    %v830 = vpop.permute.xlu0 %829
    %831 = vrot.lane.b32.xlu0 %v416, 104
    %v832 = vpop.permute.xlu0 %831
    %v833 = vsel %vm454, %v826, 0
    %v835 = vsel %vm454, %v828, 0
    %v837 = vsel %vm454, %v830, 0
    %v839 = vsel %vm454, %v832, 0
    %841 = vmatpush.xpose.msra.mxu0 0.0
    %842 = vmatpush.xpose.msra.mxu0 0.0
    %843 = vmatpush.xpose.msra.mxu0 0.0
    %844 = vmatpush.xpose.msra.mxu0 0.0
    %845 = vmatpush.xpose.msra.mxu0 0.0
    %846 = vmatpush.xpose.msra.mxu0 0.0
    %847 = vmatpush.xpose.msra.mxu0 0.0
    %848 = vmatpush.xpose.msra.mxu0 0.0
    %849 = vmatpush.xpose.msra.mxu0 0.0
    %850 = vmatpush.xpose.msra.mxu0 0.0
    %851 = vmatpush.xpose.msra.mxu0 0.0
    %852 = vmatpush.xpose.msra.mxu0 0.0
    %853 = vmatpush.xpose.msra.mxu0 0.0
    %854 = vmatpush.xpose.msra.mxu0 0.0
    %855 = vmatpush.xpose.msra.mxu0 %v839
    %856 = vmatpush.xpose.msra.mxu0 %v837
    %857 = vmatmul.f32.gmra.mxu0 %v833
    %v858 = vpop.f32.mrf.mxu0
    %v859 = vadd.f32 %v448, %v858
    %860 = vmatmul.f32.gmra.mxu0 %v835
    %v861 = vpop.f32.mrf.mxu0
    %v862 = vadd.f32 %v449, %v861
    %863 = vdwg.mxu0
    %v864 = vsel %vm490, %v859, -inf
    %865 = vmax.xlane.f32.xlu0 %v864
    %v866 = vpop.xlane.xlu0 %865
    %v867 = vsel %vm490, %v862, -inf
    %868 = vmax.xlane.f32.xlu0 %v867
    %v869 = vpop.xlane.xlu0 %868
    %v870 = vsub.f32 %v859, %v866
    %v871 = vsub.f32 %v862, %v869
    %v872 = vmul.f32 %v870, 1.442695
    %v873 = vpow.pop %v872
    %v874 = vmul.f32 %v871, 1.442695
    %v875 = vpow.pop %v874
    %v876 = vsel %vm490, %v873, 0.0
    %877 = vadd.xlane.f32.xlu0 %v876
    %v878 = vpop.xlane.xlu0 %877
    %v879 = vsel %vm490, %v875, 0.0
    %880 = vadd.xlane.f32.xlu0 %v879
    %v881 = vpop.xlane.xlu0 %880
    %v882 = vrcp.pop %v878
    %v883 = vrcp.pop %v881
    %v884 = vmul.f32 %v873, %v882
    %v885 = vmul.f32 %v875, %v883
    %886 = vrot.lane.b32.xlu0 %v443, 104
    %v887 = vpop.permute.xlu0 %886
    %888 = vrot.lane.b32.xlu0 %v446, 104
    %v889 = vpop.permute.xlu0 %888
    %v893 = vsel %vm490, %v884, 0
    %v896 = vsel %vm490, %v885, 0
    %898 = vmatpush.msra.mxu0 0.0
    %899 = vmatpush.msra.mxu0 0.0
    %900 = vmatpush.msra.mxu0 0.0
    %901 = vmatpush.msra.mxu0 0.0
    %902 = vmatpush.msra.mxu0 0.0
    %903 = vmatpush.msra.mxu0 0.0
    %904 = vmatpush.msra.mxu0 0.0
    %905 = vmatpush.msra.mxu0 0.0
    %906 = vmatpush.msra.mxu0 0.0
    %907 = vmatpush.msra.mxu0 0.0
    %908 = vmatpush.msra.mxu0 0.0
    %909 = vmatpush.msra.mxu0 0.0
    %910 = vmatpush.msra.mxu0 0.0
    %911 = vmatpush.msra.mxu0 0.0
    %912 = vmatpush.msra.mxu0 %v889
    %913 = vmatpush.msra.mxu0 %v887
    %914 = vmatmul.f32.gmra.mxu0 %v893
    %v915 = vpop.f32.mrf.mxu0
    %v916 = vadd.f32 0.0, %v915
    %917 = vmatmul.f32.gmra.mxu0 %v896
    %v918 = vpop.f32.mrf.mxu0
    %v919 = vadd.f32 0.0, %v918
    %920 = vdwg.mxu0
    %v922 = vsel %vm454, %v916, 0
    %v925 = vsel %vm454, %v919, 0
    %927 = vmatpush.msra.mxu0 0.0
    %928 = vmatpush.msra.mxu0 0.0
    %929 = vmatpush.msra.mxu0 0.0
    %930 = vmatpush.msra.mxu0 0.0
    %931 = vmatpush.msra.mxu0 0.0
    %932 = vmatpush.msra.mxu0 0.0
    %933 = vmatpush.msra.mxu0 0.0
    %934 = vmatpush.msra.mxu0 0.0
    %935 = vmatpush.msra.mxu0 0.0
    %936 = vmatpush.msra.mxu0 0.0
    %937 = vmatpush.msra.mxu0 0.0
    %938 = vmatpush.msra.mxu0 0.0
    %939 = vmatpush.msra.mxu0 0.0
    %940 = vmatpush.msra.mxu0 0.0
    %941 = vmatpush.msra.mxu0 0.0
    %942 = vmatpush.msra.mxu0 %v453
    %943 = vmatmul.f32.gmra.mxu0 %v922
    %v944 = vpop.f32.mrf.mxu0
    %v945 = vadd.f32 0.0, %v944
    %946 = vmatmul.f32.gmra.mxu0 %v925
    %v947 = vpop.f32.mrf.mxu0
    %v948 = vadd.f32 0.0, %v947
    %949 = vdwg.mxu0
    %v950 = vadd.f32 %v823, %v945
    %v951 = vadd.f32 %v824, %v948
    %v952 = vld [vmem:[%s14] sm:$0x1]
    %v954 = vperm.slane %v952, 0
    %v956 = vadd.f32 %v950, %v954
    %v957 = vadd.f32 %v951, %v954
    %958 = vst.msk [vmem:[#allocation25] sm:$0xff] %vm278, %v956
    %959 = vst.msk [vmem:[#allocation25 + $0x8] sm:$0xff] %vm278, %v957
    // Predicated region
    $region122: #{tpu_custom_call.1} parent=1 // pred_check
      _
    $region123: #{tpu_custom_call.1} parent=1 // pred_check_branch
      %961 = sbr.rel (0) target = $region125
    $region124: #{tpu_custom_call.1} parent=1 // pred_region
      %963 = vsyncadd [#allocation4], 0
      %s964 = sshll.u32 [#allocation25], 4
      %s965 = int_to_ptr.vmem [resolvable:$true] %s964
      %s966 = sshll.u32 %s16, 4
      %s967 = int_to_ptr.hbm [resolvable:$true] %s966
      %972 = dma.vmem_to_hbm [thread:$0]  %s965, 256, %s967, [#allocation4], 128, 128, 8
    $region125: #{tpu_custom_call.1} parent=1 // pred_fallthru
      _
    // Predicated region
    $region126: #{tpu_custom_call.1} parent=1 // pred_check
      _
    $region127: #{tpu_custom_call.1} parent=1 // pred_check_branch
      %974 = sbr.rel (0) target = $region129
    $region128: #{tpu_custom_call.1} parent=1 // pred_region
      %976 = dma.done [#allocation4], 256
    $region129: #{tpu_custom_call.1} parent=1 // pred_fallthru
      _
    %977 = vsyncpa [#allocation3], 1
    %978 = vsyncpa [#allocation6], 1
    %979 = vsyncpa [#allocation9], 1
    %980 = vsyncpa [#allocation12], 1
    %981 = vsyncpa [#allocation15], 1
    %982 = vsyncpa [#allocation18], 1
    %983 = vsyncpa [#allocation21], 1
    %984 = vsyncpa [#allocation24], 1
    %985 = vsyncpa [#allocation4], 1

</llo_original>
